<compile_context>
chip_gen: v7x
topology: tpu7x:2x2x1
jax: 0.10.0
libtpu: 0.0.40
codegen_flags: <defaults>
</compile_context>

<pallas_src>
import jax
import jax.numpy as jnp
from jax.experimental import pallas as pl
from jax.experimental.pallas import tpu as pltpu


def gat_attention_kernel(node_t_ref, edge_t_ref, w_ht_ref, b_ht_ref,
                         a_ht_ref, v_r_ref, c_ref, att_ref):
    # node_t_ref : [D, N]        node_feat^T (same block every grid step)
    # edge_t_ref : [RT, D, N]    edge_feat rows i0:i0+RT, transposed to (i, d, j)
    # w_ht_ref   : [2H, D]       stacked [W_h ; W_t]   (PyTorch [out, in] layout)
    # b_ht_ref   : [2H, 1]       stacked [b_h ; b_t]
    # a_ht_ref   : [2H, 1]       first 2H coefficients of wt.weight
    # v_r_ref    : [D, 1]        W_r^T @ a_r^T   (folded linear_edge_r . wt)
    # c_ref      : [1, 1]        a_r . b_r + wt.bias
    # att_ref    : [RT, N]       softmax rows of the attention matrix

    # Per-column node score: a_h.(W_h x_j + b_h) + a_t.(W_t x_j + b_t)   (MXU matmul)
    ht = jnp.dot(w_ht_ref[...], node_t_ref[...],
                 preferred_element_type=jnp.float32) + b_ht_ref[...]      # [2H, N]
    s_node = jnp.sum(ht * a_ht_ref[...], axis=0, keepdims=True)           # [1, N]

    # Per-(i, j) edge score: a_r.(W_r e_ij + b_r) == e_ij . v_r + a_r.b_r
    # (VPU multiply + sublane reduce; result stays lane-dense in j)
    s_edge = jnp.sum(edge_t_ref[...] * v_r_ref[...][None, :, :], axis=1)  # [RT, N]

    energy = s_edge + s_node + c_ref[...]                                 # [RT, N]

    # Softmax over the neighbour axis (dim=-1); rows are independent.
    m = jnp.max(energy, axis=-1, keepdims=True)
    e = jnp.exp(energy - m)
    att_ref[...] = e / jnp.sum(e, axis=-1, keepdims=True)


def gat_attention(node_feat, edge_feat, params, mask=None, row_tile=None):
    """node_feat: [N, D] f32, edge_feat: [N, N, D] f32 -> attention [N, N] f32.

    `mask` is accepted for signature parity but — exactly like the PyTorch module,
    whose out-of-place masked_fill result is discarded — it has no effect.
    """
    del mask  # no-op in the original module (masked_fill result is thrown away)
    w_h, b_h, w_t, b_t, w_r, b_r, w_wt, b_wt = params
    N, D = node_feat.shape
    H = w_h.shape[0]

    # wt.weight is [1, 3H]: split into the chunks applied to h / t / r features.
    a_h, a_t, a_r = w_wt[:, :H], w_wt[:, H:2 * H], w_wt[:, 2 * H:]

    # Stack the two node projections (identical inputs) -> one MXU matmul in-kernel.
    w_ht = jnp.concatenate([w_h, w_t], axis=0).astype(jnp.float32)                 # [2H, D]
    b_ht = jnp.concatenate([b_h, b_t], axis=0).reshape(2 * H, 1).astype(jnp.float32)
    a_ht = jnp.concatenate([a_h, a_t], axis=1).reshape(2 * H, 1).astype(jnp.float32)

    # Fold linear_edge_r into wt (exact: no nonlinearity between them).
    v_r = (a_r @ w_r).reshape(D, 1).astype(jnp.float32)                            # [D, 1]
    c = (a_r @ b_r.reshape(H, 1) + b_wt.reshape(1, 1)).astype(jnp.float32)         # [1, 1]

    # Transposed layouts so every in-kernel reduction is over sublanes and the
    # result keeps the neighbour index j on the lane axis (lane-dense output).
    node_t = node_feat.T.astype(jnp.float32)                                       # [D, N]
    edge_t = jnp.transpose(edge_feat, (0, 2, 1)).astype(jnp.float32)               # [N, D, N]
    # TODO(synk): for bandwidth-bound sizes, ship edge_t as bf16 and upcast in-kernel
    # (kept f32 here to match the f32 reference tightly).

    if row_tile is None:
        # Largest aligned row tile whose edge block stays within a few MiB of VMEM.
        budget_rows = max(8, (4 * 1024 * 1024) // max(1, D * N * 4))
        row_tile = N
        for t in (1024, 512, 256, 128, 64, 32, 16, 8):
            if t <= N and t <= budget_rows and N % t == 0:
                row_tile = t
                break
    assert N % row_tile == 0, "row_tile must divide the number of nodes"
    grid = (N // row_tile,)

    att = pl.pallas_call(
        gat_attention_kernel,
        out_shape=jax.ShapeDtypeStruct((N, N), jnp.float32),
        grid_spec=pltpu.PrefetchScalarGridSpec(
            num_scalar_prefetch=0,
            grid=grid,
            in_specs=[
                pl.BlockSpec((D, N),           lambda r: (0, 0)),     # node_feat^T
                pl.BlockSpec((row_tile, D, N), lambda r: (r, 0, 0)),  # edge rows (i, d, j)
                pl.BlockSpec((2 * H, D),       lambda r: (0, 0)),     # [W_h ; W_t]
                pl.BlockSpec((2 * H, 1),       lambda r: (0, 0)),     # [b_h ; b_t]
                pl.BlockSpec((2 * H, 1),       lambda r: (0, 0)),     # wt coeffs (h, t)
                pl.BlockSpec((D, 1),           lambda r: (0, 0)),     # folded edge vector
                pl.BlockSpec((1, 1),           lambda r: (0, 0)),     # scalar bias
            ],
            out_specs=pl.BlockSpec((row_tile, N), lambda r: (r, 0)),
        ),
        compiler_params=pltpu.CompilerParams(
            dimension_semantics=("parallel",)),  # row tiles shard across v7x's 2 TCs
    )(node_t, edge_t, w_ht, b_ht, a_ht, v_r, c)

    # TODO(synk): training-mode nn.Dropout on `att` not implemented (eval: identity).
    return att


def gat_attention_ref(node_feat, edge_feat, params, mask=None):
    """Pure-JAX mirror of GATAttention.forward (eval mode)."""
    w_h, b_h, w_t, b_t, w_r, b_r, w_wt, b_wt = params
    n = node_feat.shape[0]
    node_feat_h = jnp.broadcast_to(node_feat[None, :, :], (n,) + node_feat.shape)
    node_feat_t = node_feat_h                      # both expands are over dim 0 in the module
    node_att_h = node_feat_h @ w_h.T + b_h
    node_att_t = node_feat_t @ w_t.T + b_t
    edge_att_r = edge_feat @ w_r.T + b_r
    energy = (jnp.concatenate([node_att_h, node_att_t, edge_att_r], -1) @ w_wt.T
              + b_wt)[..., 0]                                                     # [N, N]
    # The module's `energy_att.masked_fill(mask, -1e5)` is out-of-place and its result
    # is discarded, so the mask does not change the output.
    del mask
    return jax.nn.softmax(energy, axis=-1)         # dropout is identity in eval mode


def init_params(key, att_input_dim, hidden_dim):
    """Deterministic PyTorch-Linear-style init: weights [out, in], biases [out]."""
    ks = jax.random.split(key, 8)

    def lin(kw, kb, fan_in, fan_out):
        bound = 1.0 / jnp.sqrt(jnp.float32(fan_in))
        w = jax.random.uniform(kw, (fan_out, fan_in), jnp.float32, -bound, bound)
        b = jax.random.uniform(kb, (fan_out,), jnp.float32, -bound, bound)
        return w, b

    w_h, b_h = lin(ks[0], ks[1], att_input_dim, hidden_dim)
    w_t, b_t = lin(ks[2], ks[3], att_input_dim, hidden_dim)
    w_r, b_r = lin(ks[4], ks[5], att_input_dim, hidden_dim)
    w_wt, b_wt = lin(ks[6], ks[7], hidden_dim * 3, 1)
    return (w_h, b_h, w_t, b_t, w_r, b_r, w_wt, b_wt)


if __name__ == "__main__":
    key = jax.random.PRNGKey(0)
    k_param, k_node, k_edge = jax.random.split(key, 3)

    # Small shapes consistent with the module: N nodes, att_input_dim, hidden_dim.
    N, att_input_dim, hidden_dim = 16, 32, 32

    params = init_params(k_param, att_input_dim, hidden_dim)
    node_feat = jax.random.normal(k_node, (N, att_input_dim), jnp.float32)
    edge_feat = jax.random.normal(k_edge, (N, N, att_input_dim), jnp.float32)

    # row_tile=8 -> a 2-step grid, exercising the row-tiled pipeline.
    att = gat_attention(node_feat, edge_feat, params, row_tile=8)
    att = jax.block_until_ready(att)

    ref = gat_attention_ref(node_feat, edge_feat, params)
    assert att.shape == (N, N)
    assert jnp.allclose(att, ref, atol=1e-4, rtol=1e-4)
    assert jnp.allclose(jnp.sum(att, axis=-1), jnp.ones((N,)), atol=1e-5)

    print("KERNEL_OK")
</pallas_src>

<mosaic_0001>
module attributes {stable_mosaic.version = 11 : i64} {
  func.func @gat_attention_kernel(%arg0: i32, %arg1: memref<32x16xf32, #tpu.memory_space<vmem>>, %arg2: memref<8x32x16xf32, #tpu.memory_space<vmem>>, %arg3: memref<64x32xf32, #tpu.memory_space<vmem>>, %arg4: memref<64x1xf32, #tpu.memory_space<vmem>>, %arg5: memref<64x1xf32, #tpu.memory_space<vmem>>, %arg6: memref<32x1xf32, #tpu.memory_space<vmem>>, %arg7: memref<1x1xf32, #tpu.memory_space<vmem>>, %arg8: memref<8x16xf32, #tpu.memory_space<vmem>>) attributes {dimension_semantics = [#tpu.dimension_semantics<parallel>], iteration_bounds = array<i64: 2>, scalar_prefetch = 0 : i64, scratch_operands = 0 : i64, tpu.core_type = #tpu.core_type<tc>, window_params = [{pipeline_mode = #tpu.pipeline_mode<synchronous>, transform_indices = @transform_0, window_bounds = array<i64: 32, 16>}, {transform_indices = @transform_1, window_bounds = array<i64: 8, 32, 16>}, {pipeline_mode = #tpu.pipeline_mode<synchronous>, transform_indices = @transform_2, window_bounds = array<i64: 64, 32>}, {pipeline_mode = #tpu.pipeline_mode<synchronous>, transform_indices = @transform_3, window_bounds = array<i64: 64, 1>}, {pipeline_mode = #tpu.pipeline_mode<synchronous>, transform_indices = @transform_4, window_bounds = array<i64: 64, 1>}, {pipeline_mode = #tpu.pipeline_mode<synchronous>, transform_indices = @transform_5, window_bounds = array<i64: 32, 1>}, {pipeline_mode = #tpu.pipeline_mode<synchronous>, transform_indices = @transform_6, window_bounds = array<i64: 1, 1>}, {transform_indices = @transform_7, window_bounds = array<i64: 8, 16>}]} {
    %c0 = arith.constant 0 : index
    %c0_0 = arith.constant 0 : index
    %0 = vector.load %arg3[%c0, %c0_0] : memref<64x32xf32, #tpu.memory_space<vmem>>, vector<64x32xf32>
    %c0_1 = arith.constant 0 : index
    %c0_2 = arith.constant 0 : index
    %1 = vector.load %arg1[%c0_1, %c0_2] : memref<32x16xf32, #tpu.memory_space<vmem>>, vector<32x16xf32>
    %cst = arith.constant dense<0.000000e+00> : vector<64x16xf32>
    %2 = tpu.matmul %0, %1, %cst {dimension_numbers = #tpu.dot_dimension_numbers<[1], [0], [0], [1], [0, 0, 1, 1], [], []>} : vector<64x32xf32>, vector<32x16xf32>, vector<64x16xf32> -> vector<64x16xf32>
    %c0_3 = arith.constant 0 : index
    %c0_4 = arith.constant 0 : index
    %3 = vector.load %arg4[%c0_3, %c0_4] : memref<64x1xf32, #tpu.memory_space<vmem>>, vector<64x1xf32>
    %4 = vector.broadcast %3 : vector<64x1xf32> to vector<64x16xf32>
    %5 = arith.addf %2, %4 : vector<64x16xf32>
    %c0_5 = arith.constant 0 : index
    %c0_6 = arith.constant 0 : index
    %6 = vector.load %arg5[%c0_5, %c0_6] : memref<64x1xf32, #tpu.memory_space<vmem>>, vector<64x1xf32>
    %7 = vector.broadcast %6 : vector<64x1xf32> to vector<64x16xf32>
    %8 = arith.mulf %5, %7 : vector<64x16xf32>
    %cst_7 = arith.constant dense<0.000000e+00> : vector<16xf32>
    %9 = vector.multi_reduction <add>, %8, %cst_7 [0] : vector<64x16xf32> to vector<16xf32>
    %10 = vector.shape_cast %9 : vector<16xf32> to vector<1x16xf32>
    %c0_8 = arith.constant 0 : index
    %c0_9 = arith.constant 0 : index
    %c0_10 = arith.constant 0 : index
    %11 = vector.load %arg2[%c0_8, %c0_9, %c0_10] : memref<8x32x16xf32, #tpu.memory_space<vmem>>, vector<8x32x16xf32>
    %c0_11 = arith.constant 0 : index
    %c0_12 = arith.constant 0 : index
    %12 = vector.load %arg6[%c0_11, %c0_12] : memref<32x1xf32, #tpu.memory_space<vmem>>, vector<32x1xf32>
    %13 = vector.shape_cast %12 : vector<32x1xf32> to vector<1x32x1xf32>
    %14 = vector.broadcast %13 : vector<1x32x1xf32> to vector<8x32x16xf32>
    %15 = arith.mulf %11, %14 : vector<8x32x16xf32>
    %cst_13 = arith.constant dense<0.000000e+00> : vector<8x16xf32>
    %16 = vector.multi_reduction <add>, %15, %cst_13 [1] : vector<8x32x16xf32> to vector<8x16xf32>
    %17 = vector.broadcast %10 : vector<1x16xf32> to vector<8x16xf32>
    %18 = arith.addf %16, %17 : vector<8x16xf32>
    %c0_14 = arith.constant 0 : index
    %c0_15 = arith.constant 0 : index
    %19 = vector.load %arg7[%c0_14, %c0_15] : memref<1x1xf32, #tpu.memory_space<vmem>>, vector<1x1xf32>
    %20 = vector.broadcast %19 : vector<1x1xf32> to vector<8x16xf32>
    %21 = arith.addf %18, %20 : vector<8x16xf32>
    %cst_16 = arith.constant dense<0xFF800000> : vector<8xf32>
    %22 = vector.multi_reduction <maximumf>, %21, %cst_16 [1] : vector<8x16xf32> to vector<8xf32>
    %23 = vector.shape_cast %22 : vector<8xf32> to vector<8x1xf32>
    %24 = vector.broadcast %23 : vector<8x1xf32> to vector<8x16xf32>
    %25 = arith.subf %21, %24 : vector<8x16xf32>
    %26 = math.exp %25 : vector<8x16xf32>
    %cst_17 = arith.constant dense<0.000000e+00> : vector<8xf32>
    %27 = vector.multi_reduction <add>, %26, %cst_17 [1] : vector<8x16xf32> to vector<8xf32>
    %28 = vector.shape_cast %27 : vector<8xf32> to vector<8x1xf32>
    %29 = vector.broadcast %28 : vector<8x1xf32> to vector<8x16xf32>
    %30 = arith.divf %26, %29 : vector<8x16xf32>
    %c0_18 = arith.constant 0 : index
    %c0_19 = arith.constant 0 : index
    %31 = vector.load %arg8[%c0_18, %c0_19] : memref<8x16xf32, #tpu.memory_space<vmem>>, vector<8x16xf32>
    tpu.vector_store %arg8[%c0_18, %c0_19], %30 {strides = array<i32>} : memref<8x16xf32, #tpu.memory_space<vmem>>, vector<8x16xf32>,
    return
  }
  func.func @transform_0(%arg0: i32) -> (i32, i32) {
    %c0_i32 = arith.constant 0 : i32
    %c0_i32_0 = arith.constant 0 : i32
    %c0_i32_1 = arith.constant 0 : i32
    return %c0_i32, %c0_i32_0 : i32, i32
  }
  func.func @transform_1(%arg0: i32) -> (i32, i32, i32) {
    %c0_i32 = arith.constant 0 : i32
    %c0_i32_0 = arith.constant 0 : i32
    %c0_i32_1 = arith.constant 0 : i32
    return %arg0, %c0_i32, %c0_i32_0 : i32, i32, i32
  }
  func.func @transform_2(%arg0: i32) -> (i32, i32) {
    %c0_i32 = arith.constant 0 : i32
    %c0_i32_0 = arith.constant 0 : i32
    %c0_i32_1 = arith.constant 0 : i32
    return %c0_i32, %c0_i32_0 : i32, i32
  }
  func.func @transform_3(%arg0: i32) -> (i32, i32) {
    %c0_i32 = arith.constant 0 : i32
    %c0_i32_0 = arith.constant 0 : i32
    %c0_i32_1 = arith.constant 0 : i32
    return %c0_i32, %c0_i32_0 : i32, i32
  }
  func.func @transform_4(%arg0: i32) -> (i32, i32) {
    %c0_i32 = arith.constant 0 : i32
    %c0_i32_0 = arith.constant 0 : i32
    %c0_i32_1 = arith.constant 0 : i32
    return %c0_i32, %c0_i32_0 : i32, i32
  }
  func.func @transform_5(%arg0: i32) -> (i32, i32) {
    %c0_i32 = arith.constant 0 : i32
    %c0_i32_0 = arith.constant 0 : i32
    %c0_i32_1 = arith.constant 0 : i32
    return %c0_i32, %c0_i32_0 : i32, i32
  }
  func.func @transform_6(%arg0: i32) -> (i32, i32) {
    %c0_i32 = arith.constant 0 : i32
    %c0_i32_0 = arith.constant 0 : i32
    %c0_i32_1 = arith.constant 0 : i32
    return %c0_i32, %c0_i32_0 : i32, i32
  }
  func.func @transform_7(%arg0: i32) -> (i32, i32) {
    %c0_i32 = arith.constant 0 : i32
    %c0_i32_0 = arith.constant 0 : i32
    return %arg0, %c0_i32 : i32, i32
  }
}

</mosaic_0001>

<llo_original>
// kernel: tpu_custom_call.1
$region0: #{tpu_custom_call.1}
  #allocation0 [shape = 'u32[]', space=smem, size = 0x4, offset = 0x4, fixed_abs, tag = 'smem constant byte address 0x4 - core index']
  #allocation1 [shape = 'u32[144,128]{1,0:T(1,128)}', space=vmem, size = 0x12000, scoped, tag = 'internal scratch']
  #allocation2 [shape = 'f32[1,1]{1,0:T(1,128)S(1)}', space=vmem, size = 0x200, scoped, tag = 'scoped memory for tpu_custom_call.1']
  %s0 = inlined_call_operand.vmem [shape: f32[32,16], index: 0, kind: input, shape index: {}]
  %s1 = inlined_call_operand.vmem [shape: f32[16,32,16], index: 1, kind: input, shape index: {}]
  %s2 = inlined_call_operand.vmem [shape: f32[64,32], index: 2, kind: input, shape index: {}]
  %s3 = inlined_call_operand.vmem [shape: f32[64,1], index: 3, kind: input, shape index: {}]
  %s4 = inlined_call_operand.vmem [shape: f32[64,1], index: 4, kind: input, shape index: {}]
  %s5 = inlined_call_operand.vmem [shape: f32[32,1], index: 5, kind: input, shape index: {}]
  %s6 = inlined_call_operand.<no memory space> [shape: f32[1,1], index: 6, kind: input, shape index: {}]
  %s7 = inlined_call_operand.hbm [shape: f32[16,16], index: 7, kind: output, shape index: {}]
  %s8 = sld [smem:[#allocation0]]
  $region61: #{tpu_custom_call.1} parent=0
    _
  %s10 = ssub.s32 1, %s8
  %s11 = scalar_select 0, %s10, %s8
  %v12 = vstv %s6
  %13 = vst [vmem:[#allocation2] sm:$0x1] %v12
  $region1: #{tpu_custom_call.1} parent=0
    #allocation3 [shape = 'u8[8192]{0}', space=vmem, size = 0x2000, scoped, tag = 'output window, operand 0']
    #allocation4 [shape = 's32[2]{0}', space=sflag, size = 0x8, scoped, tag = 'scoped memory for tpu_custom_call.1']
    %14 = vsyncpa [#allocation4], 0
    %s15 = scalar_lea.sflag [#allocation4], 1
    %16 = vsyncpa %s15, 0
    loop: start=0, step=1, limit=4
    $region2: #{tpu_custom_call.1} parent=1 // loop_pre_header
      _
    $region3: #{tpu_custom_call.1} parent=1 // loop_header
      %s18 = sphi 0, %s22
      %p19 = scmp.ge.s32.totalorder %s18, 4
      %s26 = sphi 0, %s26
      %s28 = sphi 0, %s26
      %s29 = sphi 0, %s28
      %s43 = sphi 0, %s29
      %s49 = sphi 0, %s51
      %s52 = sphi 0, %s49
      %s53 = sphi 0, %s52
      %s69 = sphi 0, %s53
      %s73 = sphi 0, %s73
      %s75 = sphi 0, %s73
      %s76 = sphi 0, %s75
      %s90 = sphi 0, %s76
      %s94 = sphi 0, %s94
      %s96 = sphi 0, %s94
      %s97 = sphi 0, %s96
      %s111 = sphi 0, %s97
      %s115 = sphi 0, %s115
      %s117 = sphi 0, %s115
      %s118 = sphi 0, %s117
      %s132 = sphi 0, %s118
      %s136 = sphi 0, %s136
      %s138 = sphi 0, %s136
      %s139 = sphi 0, %s138
      %s153 = sphi 0, %s139
      %s157 = sphi 0, %s157
      %s159 = sphi 0, %s157
      %s160 = sphi 0, %s159
      %s174 = sphi 0, %s160
      %s180 = sphi 0, %s182
      %s183 = sphi 0, %s180
      %s184 = sphi 0, %s183
      %s200 = sphi 0, %s184
    $region4: #{tpu_custom_call.1} parent=1 // loop_header_branch
      %21 = sbr.rel (%p19) target = $region8
    $region5: #{tpu_custom_call.1} parent=1 // loop_body
      %s23 = ssub.s32 %s18, 1
      %s24 = ssub.s32 %s18, 2
      %s25 = sadd.s32 %s18, 1
      %s27 = sadd.s32 %s26, 1
      %p30 = scmp.eq.s32.totalorder %s18, 1
      %p31 = scmp.ne.s32.totalorder %s26, %s28
      %p32 = scmp.eq.s32.totalorder %s18, 0
      %p33 = por %p31, %p32
      %p34 = scmp.ne.s32.totalorder %s26, %s28
      %p35 = scmp.eq.s32.totalorder %s23, 1
      %p36 = por %p34, %p35
      %p37 = scmp.ne.s32.totalorder %s28, %s29
      %p38 = scmp.eq.s32.totalorder %s23, 0
      %p39 = por %p37, %p38
      %p40 = scmp.ne.s32.totalorder %s28, %s29
      %p41 = scmp.eq.s32.totalorder %s24, 1
      %p42 = por %p40, %p41
      %p44 = scmp.ne.s32.totalorder %s29, %s43
      %p45 = scmp.eq.s32.totalorder %s24, 0
      %p46 = por %p44, %p45
      %s47 = ssub.s32 %s18, %s25
      %p48 = scmp.eq.s32.totalorder %s47, 0
      %s50 = sadd.s32 %s49, 1
      %s51 = scalar_select %p48, %s49, %s50
      %p54 = pneg %p48
      %p55 = scmp.eq.s32.totalorder %s18, 1
      %p56 = por %p54, %p55
      %p57 = scmp.ne.s32.totalorder %s49, %s52
      %p58 = scmp.eq.s32.totalorder %s18, 0
      %p59 = por %p57, %p58
      %p60 = scmp.ne.s32.totalorder %s49, %s52
      %p61 = scmp.eq.s32.totalorder %s23, 1
      %p62 = por %p60, %p61
      %p63 = scmp.ne.s32.totalorder %s52, %s53
      %p64 = scmp.eq.s32.totalorder %s23, 0
      %p65 = por %p63, %p64
      %p66 = scmp.ne.s32.totalorder %s52, %s53
      %p67 = scmp.eq.s32.totalorder %s24, 1
      %p68 = por %p66, %p67
      %p70 = scmp.ne.s32.totalorder %s53, %s69
      %p71 = scmp.eq.s32.totalorder %s24, 0
      %p72 = por %p70, %p71
      %s74 = sadd.s32 %s73, 1
      %p77 = scmp.eq.s32.totalorder %s18, 1
      %p78 = scmp.ne.s32.totalorder %s73, %s75
      %p79 = scmp.eq.s32.totalorder %s18, 0
      %p80 = por %p78, %p79
      %p81 = scmp.ne.s32.totalorder %s73, %s75
      %p82 = scmp.eq.s32.totalorder %s23, 1
      %p83 = por %p81, %p82
      %p84 = scmp.ne.s32.totalorder %s75, %s76
      %p85 = scmp.eq.s32.totalorder %s23, 0
      %p86 = por %p84, %p85
      %p87 = scmp.ne.s32.totalorder %s75, %s76
      %p88 = scmp.eq.s32.totalorder %s24, 1
      %p89 = por %p87, %p88
      %p91 = scmp.ne.s32.totalorder %s76, %s90
      %p92 = scmp.eq.s32.totalorder %s24, 0
      %p93 = por %p91, %p92
      %s95 = sadd.s32 %s94, 1
      %p98 = scmp.eq.s32.totalorder %s18, 1
      %p99 = scmp.ne.s32.totalorder %s94, %s96
      %p100 = scmp.eq.s32.totalorder %s18, 0
      %p101 = por %p99, %p100
      %p102 = scmp.ne.s32.totalorder %s94, %s96
      %p103 = scmp.eq.s32.totalorder %s23, 1
      %p104 = por %p102, %p103
      %p105 = scmp.ne.s32.totalorder %s96, %s97
      %p106 = scmp.eq.s32.totalorder %s23, 0
      %p107 = por %p105, %p106
      %p108 = scmp.ne.s32.totalorder %s96, %s97
      %p109 = scmp.eq.s32.totalorder %s24, 1
      %p110 = por %p108, %p109
      %p112 = scmp.ne.s32.totalorder %s97, %s111
      %p113 = scmp.eq.s32.totalorder %s24, 0
      %p114 = por %p112, %p113
      %s116 = sadd.s32 %s115, 1
      %p119 = scmp.eq.s32.totalorder %s18, 1
      %p120 = scmp.ne.s32.totalorder %s115, %s117
      %p121 = scmp.eq.s32.totalorder %s18, 0
      %p122 = por %p120, %p121
      %p123 = scmp.ne.s32.totalorder %s115, %s117
      %p124 = scmp.eq.s32.totalorder %s23, 1
      %p125 = por %p123, %p124
      %p126 = scmp.ne.s32.totalorder %s117, %s118
      %p127 = scmp.eq.s32.totalorder %s23, 0
      %p128 = por %p126, %p127
      %p129 = scmp.ne.s32.totalorder %s117, %s118
      %p130 = scmp.eq.s32.totalorder %s24, 1
      %p131 = por %p129, %p130
      %p133 = scmp.ne.s32.totalorder %s118, %s132
      %p134 = scmp.eq.s32.totalorder %s24, 0
      %p135 = por %p133, %p134
      %s137 = sadd.s32 %s136, 1
      %p140 = scmp.eq.s32.totalorder %s18, 1
      %p141 = scmp.ne.s32.totalorder %s136, %s138
      %p142 = scmp.eq.s32.totalorder %s18, 0
      %p143 = por %p141, %p142
      %p144 = scmp.ne.s32.totalorder %s136, %s138
      %p145 = scmp.eq.s32.totalorder %s23, 1
      %p146 = por %p144, %p145
      %p147 = scmp.ne.s32.totalorder %s138, %s139
      %p148 = scmp.eq.s32.totalorder %s23, 0
      %p149 = por %p147, %p148
      %p150 = scmp.ne.s32.totalorder %s138, %s139
      %p151 = scmp.eq.s32.totalorder %s24, 1
      %p152 = por %p150, %p151
      %p154 = scmp.ne.s32.totalorder %s139, %s153
      %p155 = scmp.eq.s32.totalorder %s24, 0
      %p156 = por %p154, %p155
      %s158 = sadd.s32 %s157, 1
      %p161 = scmp.eq.s32.totalorder %s18, 1
      %p162 = scmp.ne.s32.totalorder %s157, %s159
      %p163 = scmp.eq.s32.totalorder %s18, 0
      %p164 = por %p162, %p163
      %p165 = scmp.ne.s32.totalorder %s157, %s159
      %p166 = scmp.eq.s32.totalorder %s23, 1
      %p167 = por %p165, %p166
      %p168 = scmp.ne.s32.totalorder %s159, %s160
      %p169 = scmp.eq.s32.totalorder %s23, 0
      %p170 = por %p168, %p169
      %p171 = scmp.ne.s32.totalorder %s159, %s160
      %p172 = scmp.eq.s32.totalorder %s24, 1
      %p173 = por %p171, %p172
      %p175 = scmp.ne.s32.totalorder %s160, %s174
      %p176 = scmp.eq.s32.totalorder %s24, 0
      %p177 = por %p175, %p176
      %s178 = ssub.s32 %s18, %s25
      %p179 = scmp.eq.s32.totalorder %s178, 0
      %s181 = sadd.s32 %s180, 1
      %s182 = scalar_select %p179, %s180, %s181
      %p185 = pneg %p179
      %p186 = scmp.eq.s32.totalorder %s18, 1
      %p187 = por %p185, %p186
      %p188 = scmp.ne.s32.totalorder %s180, %s183
      %p189 = scmp.eq.s32.totalorder %s18, 0
      %p190 = por %p188, %p189
      %p191 = scmp.ne.s32.totalorder %s180, %s183
      %p192 = scmp.eq.s32.totalorder %s23, 1
      %p193 = por %p191, %p192
      %p194 = scmp.ne.s32.totalorder %s183, %s184
      %p195 = scmp.eq.s32.totalorder %s23, 0
      %p196 = por %p194, %p195
      %p197 = scmp.ne.s32.totalorder %s183, %s184
      %p198 = scmp.eq.s32.totalorder %s24, 1
      %p199 = por %p197, %p198
      %p201 = scmp.ne.s32.totalorder %s184, %s200
      %p202 = scmp.eq.s32.totalorder %s24, 0
      %p203 = por %p201, %p202
      %p204 = scmp.le.s32.totalorder 1, %s18
      %p205 = scmp.lt.s32.totalorder %s18, 3
      %p206 = pnand %p204, %p205
      %p207 = pneg %p206
      // Predicated region
      $region9: #{tpu_custom_call.1} parent=5 // pred_check
        _
      $region10: #{tpu_custom_call.1} parent=5 // pred_check_branch
        %209 = sbr.rel (%p206) target = $region12
      $region11: #{tpu_custom_call.1} parent=5 // pred_region
        %s210 = ssub.s32 %s18, 1
        // Predicated region
        $region13: #{tpu_custom_call.1} parent=11 // pred_check
          %p211 = pneg %p39
        $region14: #{tpu_custom_call.1} parent=11 // pred_check_branch
          %213 = sbr.rel (%p211) target = $region16
        $region15: #{tpu_custom_call.1} parent=11 // pred_region
          _
        $region16: #{tpu_custom_call.1} parent=11 // pred_fallthru
          _
        // Predicated region
        $region17: #{tpu_custom_call.1} parent=11 // pred_check
          %p214 = pneg %p86
        $region18: #{tpu_custom_call.1} parent=11 // pred_check_branch
          %216 = sbr.rel (%p214) target = $region20
        $region19: #{tpu_custom_call.1} parent=11 // pred_region
          _
        $region20: #{tpu_custom_call.1} parent=11 // pred_fallthru
          _
        // Predicated region
        $region21: #{tpu_custom_call.1} parent=11 // pred_check
          %p217 = pneg %p107
        $region22: #{tpu_custom_call.1} parent=11 // pred_check_branch
          %219 = sbr.rel (%p217) target = $region24
        $region23: #{tpu_custom_call.1} parent=11 // pred_region
          _
        $region24: #{tpu_custom_call.1} parent=11 // pred_fallthru
          _
        // Predicated region
        $region25: #{tpu_custom_call.1} parent=11 // pred_check
          %p220 = pneg %p128
        $region26: #{tpu_custom_call.1} parent=11 // pred_check_branch
          %222 = sbr.rel (%p220) target = $region28
        $region27: #{tpu_custom_call.1} parent=11 // pred_region
          _
        $region28: #{tpu_custom_call.1} parent=11 // pred_fallthru
          _
        // Predicated region
        $region29: #{tpu_custom_call.1} parent=11 // pred_check
          %p223 = pneg %p149
        $region30: #{tpu_custom_call.1} parent=11 // pred_check_branch
          %225 = sbr.rel (%p223) target = $region32
        $region31: #{tpu_custom_call.1} parent=11 // pred_region
          _
        $region32: #{tpu_custom_call.1} parent=11 // pred_fallthru
          _
        // Predicated region
        $region33: #{tpu_custom_call.1} parent=11 // pred_check
          %p226 = pneg %p170
        $region34: #{tpu_custom_call.1} parent=11 // pred_check_branch
          %228 = sbr.rel (%p226) target = $region36
        $region35: #{tpu_custom_call.1} parent=11 // pred_region
          _
        $region36: #{tpu_custom_call.1} parent=11 // pred_fallthru
          _
      $region12: #{tpu_custom_call.1} parent=5 // pred_fallthru
        _
      %p229 = scmp.lt.s32.totalorder %s18, 2
      // Predicated region
      $region37: #{tpu_custom_call.1} parent=5 // pred_check
        %p230 = pneg %p229
      $region38: #{tpu_custom_call.1} parent=5 // pred_check_branch
        %232 = sbr.rel (%p230) target = $region40
      $region39: #{tpu_custom_call.1} parent=5 // pred_region
        // Predicated region
        $region41: #{tpu_custom_call.1} parent=39 // pred_check
          %p233 = pneg %p59
        $region42: #{tpu_custom_call.1} parent=39 // pred_check_branch
          %235 = sbr.rel (%p233) target = $region44
        $region43: #{tpu_custom_call.1} parent=39 // pred_region
          %s236 = smul.u32 8, %s18
          %p237 = scmp.lt.s32.totalorder %s236, 15
          %s238 = scalar_select %p237, %s236, 15
          %s239 = smul.addr %s238, 4
          %s240 = smul.addr %s239, 8
          %s241 = scalar_lea.vmem %s1, %s240
          %s242 = smul.u32 8, %s18
        $region44: #{tpu_custom_call.1} parent=39 // pred_fallthru
          _
      $region40: #{tpu_custom_call.1} parent=5 // pred_fallthru
        _
      %p243 = scmp.le.s32.totalorder 1, %s18
      %p244 = scmp.lt.s32.totalorder %s18, 3
      %p245 = pnand %p243, %p244
      %p246 = pneg %p245
      // Predicated region
      $region45: #{tpu_custom_call.1} parent=5 // pred_check
        _
      $region46: #{tpu_custom_call.1} parent=5 // pred_check_branch
        %248 = sbr.rel (%p245) target = $region48
      $region47: #{tpu_custom_call.1} parent=5 // pred_region
        %s249 = ssub.s32 %s18, 1
        %p250 = pneg %p39
        %p251 = pneg %p36
        %s252 = smul.u32 8, %s23
        %p253 = scmp.lt.s32.totalorder %s252, 15
        %s254 = scalar_select %p253, %s252, 15
        %s255 = smul.addr %s254, 4
        %s256 = smul.addr %s255, 8
        %s257 = scalar_lea.vmem %s1, %s256
        %p258 = pneg %p65
        %p259 = pneg %p62
        %p260 = pneg %p86
        %p261 = pneg %p83
        %p262 = pneg %p107
        %p263 = pneg %p104
        %p264 = pneg %p128
        %p265 = pneg %p125
        %p266 = pneg %p149
        %p267 = pneg %p146
        %p268 = pneg %p170
        %p269 = pneg %p167
        %p270 = pneg %p196
        %p271 = pneg %p193
        %s272 = sand.u32 %s183, 1
        %s273 = scalar_lea.sflag [#allocation4], %s272
        %s274 = sand.u32 %s183, 1
        %s275 = smul.addr %s274, 8
        %s276 = scalar_lea.vmem [#allocation3], %s275
        %s277 = smul.u32 8, %s23
        %p278 = scmp.lt.s32.totalorder %s277, 15
        %s279 = scalar_select %p278, %s277, 15
        %s280 = smul.addr %s279, 4
        %s281 = smul.addr %s280, 8
        %s282 = scalar_lea.vmem %s1, %s281
        %s283 = smul.u32 8, %s23
        %v284 = vld [vmem:[%s2] sm:$0xff]
        %v285 = vld [vmem:[%s2 + $0x8] sm:$0xff]
        %v286 = vld [vmem:[%s2 + $0x10] sm:$0xff]
        %v287 = vld [vmem:[%s2 + $0x18] sm:$0xff]
        %v288 = vld [vmem:[%s2 + $0x20] sm:$0xff]
        %v289 = vld [vmem:[%s2 + $0x28] sm:$0xff]
        %v290 = vld [vmem:[%s2 + $0x30] sm:$0xff]
        %v291 = vld [vmem:[%s2 + $0x38] sm:$0xff]
        %v292 = vld [vmem:[%s0] sm:$0xff]
        %v293 = vld [vmem:[%s0 + $0x8] sm:$0xff]
        %v294 = vld [vmem:[%s0 + $0x10] sm:$0xff]
        %v295 = vld [vmem:[%s0 + $0x18] sm:$0xff]
        %v296 = vld [vmem:[%s3] sm:$0xff]
        %v297 = vld [vmem:[%s3 + $0x8] sm:$0xff]
        %v298 = vld [vmem:[%s3 + $0x10] sm:$0xff]
        %v299 = vld [vmem:[%s3 + $0x18] sm:$0xff]
        %v300 = vld [vmem:[%s3 + $0x20] sm:$0xff]
        %v301 = vld [vmem:[%s3 + $0x28] sm:$0xff]
        %v302 = vld [vmem:[%s3 + $0x30] sm:$0xff]
        %v303 = vld [vmem:[%s3 + $0x38] sm:$0xff]
        %305 = vset.pattern.permute.xlu0 0
        %306 = vperm.xlu0 %305, %v296
        %v307 = vpop.permute.xlu0 %306
        %310 = vset.pattern.permute.xlu0 0
        %311 = vperm.xlu0 %310, %v297
        %v312 = vpop.permute.xlu0 %311
        %315 = vset.pattern.permute.xlu0 0
        %316 = vperm.xlu0 %315, %v298
        %v317 = vpop.permute.xlu0 %316
        %320 = vset.pattern.permute.xlu0 0
        %321 = vperm.xlu0 %320, %v299
        %v322 = vpop.permute.xlu0 %321
        %325 = vset.pattern.permute.xlu0 0
        %326 = vperm.xlu0 %325, %v300
        %v327 = vpop.permute.xlu0 %326
        %330 = vset.pattern.permute.xlu0 0
        %331 = vperm.xlu0 %330, %v301
        %v332 = vpop.permute.xlu0 %331
        %335 = vset.pattern.permute.xlu0 0
        %336 = vperm.xlu0 %335, %v302
        %v337 = vpop.permute.xlu0 %336
        %340 = vset.pattern.permute.xlu0 0
        %341 = vperm.xlu0 %340, %v303
        %v342 = vpop.permute.xlu0 %341
        %vm344 = vcmask 261120
        %v346 = vsel %vm344, %v284, 0
        %v349 = vsel %vm344, %v285, 0
        %v352 = vsel %vm344, %v286, 0
        %v355 = vsel %vm344, %v287, 0
        %v358 = vsel %vm344, %v288, 0
        %v361 = vsel %vm344, %v289, 0
        %v364 = vsel %vm344, %v290, 0
        %v367 = vsel %vm344, %v291, 0
        %369 = vmatprep.subr.mxu0 0.0
        %370 = vmatpush1.msra.mxu0 %v292
        %371 = vmatprep.subr.mxu0 0.0
        %372 = vmatpush1.msra.mxu0 %v293
        %373 = vmatprep.subr.mxu0 0.0
        %374 = vmatpush1.msra.mxu0 %v294
        %375 = vmatprep.subr.mxu0 0.0
        %376 = vmatpush1.msra.mxu0 %v295
        %377 = vmatprep.subr.mxu0 0.0
        %378 = vmatpush1.msra.mxu0 0.0
        %379 = vmatprep.subr.mxu0 0.0
        %380 = vmatpush1.msra.mxu0 0.0
        %381 = vmatprep.subr.mxu0 0.0
        %382 = vmatpush1.msra.mxu0 0.0
        %383 = vmatprep.subr.mxu0 0.0
        %384 = vmatpush1.msra.mxu0 0.0
        %385 = vmatprep.subr.mxu0 0.0
        %386 = vmatpush1.msra.mxu0 0.0
        %387 = vmatprep.subr.mxu0 0.0
        %388 = vmatpush1.msra.mxu0 0.0
        %389 = vmatprep.subr.mxu0 0.0
        %390 = vmatpush1.msra.mxu0 0.0
        %391 = vmatprep.subr.mxu0 0.0
        %392 = vmatpush1.msra.mxu0 0.0
        %393 = vmatprep.subr.mxu0 0.0
        %394 = vmatpush1.msra.mxu0 0.0
        %395 = vmatprep.subr.mxu0 0.0
        %396 = vmatpush1.msra.mxu0 0.0
        %397 = vmatprep.subr.mxu0 0.0
        %398 = vmatpush1.msra.mxu0 0.0
        %399 = vmatprep.subr.mxu0 0.0
        %400 = vmatpush1.msra.mxu0 0.0
        %401 = vmatprep.subr.mxu0 0.0
        %402 = vmatpush1.msra.mxu0 0.0
        %403 = vmatprep.subr.mxu0 0.0
        %404 = vmatpush1.msra.mxu0 0.0
        %405 = vmatprep.subr.mxu0 0.0
        %406 = vmatpush1.msra.mxu0 0.0
        %407 = vmatprep.subr.mxu0 0.0
        %408 = vmatpush1.msra.mxu0 0.0
        %409 = vmatprep.subr.mxu0 0.0
        %410 = vmatpush1.msra.mxu0 0.0
        %411 = vmatprep.subr.mxu0 0.0
        %412 = vmatpush1.msra.mxu0 0.0
        %413 = vmatprep.subr.mxu0 0.0
        %414 = vmatpush1.msra.mxu0 0.0
        %415 = vmatprep.subr.mxu0 0.0
        %416 = vmatpush1.msra.mxu0 0.0
        %417 = vmatprep.subr.mxu0 0.0
        %418 = vmatpush1.msra.mxu0 0.0
        %419 = vmatprep.subr.mxu0 0.0
        %420 = vmatpush1.msra.mxu0 0.0
        %421 = vmatprep.subr.mxu0 0.0
        %422 = vmatpush1.msra.mxu0 0.0
        %423 = vmatprep.subr.mxu0 0.0
        %424 = vmatpush1.msra.mxu0 0.0
        %425 = vmatprep.subr.mxu0 0.0
        %426 = vmatpush1.msra.mxu0 0.0
        %427 = vmatprep.subr.mxu0 0.0
        %428 = vmatpush1.msra.mxu0 0.0
        %429 = vmatprep.subr.mxu0 0.0
        %430 = vmatpush1.msra.mxu0 0.0
        %431 = vmatprep.subr.mxu0 0.0
        %432 = vmatpush1.msra.mxu0 0.0
        %433 = vmatprep.mubr.f32.mxu0 0.0
        %434 = vmatmul.mubr.f32.gmra.mrb[0].mxu0 %v346
        %v435 = vpop.f32.mrb[0].mxu0
        %v436 = vadd.f32 %v307, %v435
        %v437 = vpop.f32.mrb[0].mxu0
        %438 = vmatprep.mubr.f32.mxu0 0.0
        %439 = vmatmul.mubr.f32.gmra.mrb[0].mxu0 %v349
        %v440 = vpop.f32.mrb[0].mxu0
        %v441 = vadd.f32 %v312, %v440
        %v442 = vpop.f32.mrb[0].mxu0
        %443 = vmatprep.mubr.f32.mxu0 0.0
        %444 = vmatmul.mubr.f32.gmra.mrb[0].mxu0 %v352
        %v445 = vpop.f32.mrb[0].mxu0
        %v446 = vadd.f32 %v317, %v445
        %v447 = vpop.f32.mrb[0].mxu0
        %448 = vmatprep.mubr.f32.mxu0 0.0
        %449 = vmatmul.mubr.f32.gmra.mrb[0].mxu0 %v355
        %v450 = vpop.f32.mrb[0].mxu0
        %v451 = vadd.f32 %v322, %v450
        %v452 = vpop.f32.mrb[0].mxu0
        %453 = vmatprep.mubr.f32.mxu0 0.0
        %454 = vmatmul.mubr.f32.gmra.mrb[0].mxu0 %v358
        %v455 = vpop.f32.mrb[0].mxu0
        %v456 = vadd.f32 %v327, %v455
        %v457 = vpop.f32.mrb[0].mxu0
        %458 = vmatprep.mubr.f32.mxu0 0.0
        %459 = vmatmul.mubr.f32.gmra.mrb[0].mxu0 %v361
        %v460 = vpop.f32.mrb[0].mxu0
        %v461 = vadd.f32 %v332, %v460
        %v462 = vpop.f32.mrb[0].mxu0
        %463 = vmatprep.mubr.f32.mxu0 0.0
        %464 = vmatmul.mubr.f32.gmra.mrb[0].mxu0 %v364
        %v465 = vpop.f32.mrb[0].mxu0
        %v466 = vadd.f32 %v337, %v465
        %v467 = vpop.f32.mrb[0].mxu0
        %468 = vmatprep.mubr.f32.mxu0 0.0
        %469 = vmatmul.mubr.f32.gmra.mrb[0].mxu0 %v367
        %v470 = vpop.f32.mrb[0].mxu0
        %v471 = vadd.f32 %v342, %v470
        %v472 = vpop.f32.mrb[0].mxu0
        %473 = vdwg.mxu0
        %v474 = vld [vmem:[%s4] sm:$0xff]
        %v475 = vld [vmem:[%s4 + $0x8] sm:$0xff]
        %v476 = vld [vmem:[%s4 + $0x10] sm:$0xff]
        %v477 = vld [vmem:[%s4 + $0x18] sm:$0xff]
        %v478 = vld [vmem:[%s4 + $0x20] sm:$0xff]
        %v479 = vld [vmem:[%s4 + $0x28] sm:$0xff]
        %v480 = vld [vmem:[%s4 + $0x30] sm:$0xff]
        %v481 = vld [vmem:[%s4 + $0x38] sm:$0xff]
        %483 = vset.pattern.permute.xlu0 0
        %484 = vperm.xlu0 %483, %v474
        %v485 = vpop.permute.xlu0 %484
        %488 = vset.pattern.permute.xlu0 0
        %489 = vperm.xlu0 %488, %v475
        %v490 = vpop.permute.xlu0 %489
        %493 = vset.pattern.permute.xlu0 0
        %494 = vperm.xlu0 %493, %v476
        %v495 = vpop.permute.xlu0 %494
        %498 = vset.pattern.permute.xlu0 0
        %499 = vperm.xlu0 %498, %v477
        %v500 = vpop.permute.xlu0 %499
        %503 = vset.pattern.permute.xlu0 0
        %504 = vperm.xlu0 %503, %v478
        %v505 = vpop.permute.xlu0 %504
        %508 = vset.pattern.permute.xlu0 0
        %509 = vperm.xlu0 %508, %v479
        %v510 = vpop.permute.xlu0 %509
        %513 = vset.pattern.permute.xlu0 0
        %514 = vperm.xlu0 %513, %v480
        %v515 = vpop.permute.xlu0 %514
        %518 = vset.pattern.permute.xlu0 0
        %519 = vperm.xlu0 %518, %v481
        %v520 = vpop.permute.xlu0 %519
        %v522 = vmul.f32 %v436, %v485
        %v523 = vmul.f32 %v441, %v490
        %v524 = vmul.f32 %v446, %v495
        %v525 = vmul.f32 %v451, %v500
        %v526 = vmul.f32 %v456, %v505
        %v527 = vmul.f32 %v461, %v510
        %v528 = vmul.f32 %v466, %v515
        %v529 = vmul.f32 %v471, %v520
        %vm530 = vcmask 130048
        %v531 = vsel %vm530, %v522, 0.0
        %v532 = vsel %vm530, %v523, 0.0
        %v533 = vadd.f32 %v531, %v532
        %v534 = vsel %vm530, %v524, 0.0
        %v535 = vadd.f32 %v533, %v534
        %v536 = vsel %vm530, %v525, 0.0
        %v537 = vadd.f32 %v535, %v536
        %v538 = vsel %vm530, %v526, 0.0
        %v539 = vadd.f32 %v537, %v538
        %v540 = vsel %vm530, %v527, 0.0
        %v541 = vadd.f32 %v539, %v540
        %v542 = vsel %vm530, %v528, 0.0
        %v543 = vadd.f32 %v541, %v542
        %v544 = vsel %vm530, %v529, 0.0
        %v545 = vadd.f32 %v543, %v544
        %v546 = vrot.slane %v545, 4
        %v547 = vadd.f32 %v545, %v546
        %v548 = vrot.slane %v547, 2
        %v549 = vadd.f32 %v547, %v548
        %v550 = vrot.slane %v549, 1
        %v551 = vadd.f32 %v549, %v550
        %v552 = vld [vmem:[%s282] sm:$0xff]
        %v553 = vld [vmem:[%s282 + $0x8] sm:$0xff]
        %v554 = vld [vmem:[%s282 + $0x10] sm:$0xff]
        %v555 = vld [vmem:[%s282 + $0x18] sm:$0xff]
        %v556 = vld [vmem:[%s282 + $0x20] sm:$0xff]
        %v557 = vld [vmem:[%s282 + $0x28] sm:$0xff]
        %v558 = vld [vmem:[%s282 + $0x30] sm:$0xff]
        %v559 = vld [vmem:[%s282 + $0x38] sm:$0xff]
        %v560 = vld [vmem:[%s282 + $0x40] sm:$0xff]
        %v561 = vld [vmem:[%s282 + $0x48] sm:$0xff]
        %v562 = vld [vmem:[%s282 + $0x50] sm:$0xff]
        %v563 = vld [vmem:[%s282 + $0x58] sm:$0xff]
        %v564 = vld [vmem:[%s282 + $0x60] sm:$0xff]
        %v565 = vld [vmem:[%s282 + $0x68] sm:$0xff]
        %v566 = vld [vmem:[%s282 + $0x70] sm:$0xff]
        %v567 = vld [vmem:[%s282 + $0x78] sm:$0xff]
        %v568 = vld [vmem:[%s282 + $0x80] sm:$0xff]
        %v569 = vld [vmem:[%s282 + $0x88] sm:$0xff]
        %v570 = vld [vmem:[%s282 + $0x90] sm:$0xff]
        %v571 = vld [vmem:[%s282 + $0x98] sm:$0xff]
        %v572 = vld [vmem:[%s282 + $0xa0] sm:$0xff]
        %v573 = vld [vmem:[%s282 + $0xa8] sm:$0xff]
        %v574 = vld [vmem:[%s282 + $0xb0] sm:$0xff]
        %v575 = vld [vmem:[%s282 + $0xb8] sm:$0xff]
        %v576 = vld [vmem:[%s282 + $0xc0] sm:$0xff]
        %v577 = vld [vmem:[%s282 + $0xc8] sm:$0xff]
        %v578 = vld [vmem:[%s282 + $0xd0] sm:$0xff]
        %v579 = vld [vmem:[%s282 + $0xd8] sm:$0xff]
        %v580 = vld [vmem:[%s282 + $0xe0] sm:$0xff]
        %v581 = vld [vmem:[%s282 + $0xe8] sm:$0xff]
        %v582 = vld [vmem:[%s282 + $0xf0] sm:$0xff]
        %v583 = vld [vmem:[%s282 + $0xf8] sm:$0xff]
        %v584 = vld [vmem:[%s5] sm:$0xff]
        %v585 = vld [vmem:[%s5 + $0x8] sm:$0xff]
        %v586 = vld [vmem:[%s5 + $0x10] sm:$0xff]
        %v587 = vld [vmem:[%s5 + $0x18] sm:$0xff]
        %589 = vset.pattern.permute.xlu0 0
        %590 = vperm.xlu0 %589, %v584
        %v591 = vpop.permute.xlu0 %590
        %594 = vset.pattern.permute.xlu0 0
        %595 = vperm.xlu0 %594, %v585
        %v596 = vpop.permute.xlu0 %595
        %599 = vset.pattern.permute.xlu0 0
        %600 = vperm.xlu0 %599, %v586
        %v601 = vpop.permute.xlu0 %600
        %604 = vset.pattern.permute.xlu0 0
        %605 = vperm.xlu0 %604, %v587
        %v606 = vpop.permute.xlu0 %605
        %v608 = vmul.f32 %v552, %v591
        %v609 = vmul.f32 %v553, %v596
        %v610 = vmul.f32 %v554, %v601
        %v611 = vmul.f32 %v555, %v606
        %v612 = vmul.f32 %v556, %v591
        %v613 = vmul.f32 %v557, %v596
        %v614 = vmul.f32 %v558, %v601
        %v615 = vmul.f32 %v559, %v606
        %v616 = vmul.f32 %v560, %v591
        %v617 = vmul.f32 %v561, %v596
        %v618 = vmul.f32 %v562, %v601
        %v619 = vmul.f32 %v563, %v606
        %v620 = vmul.f32 %v564, %v591
        %v621 = vmul.f32 %v565, %v596
        %v622 = vmul.f32 %v566, %v601
        %v623 = vmul.f32 %v567, %v606
        %v624 = vmul.f32 %v568, %v591
        %v625 = vmul.f32 %v569, %v596
        %v626 = vmul.f32 %v570, %v601
        %v627 = vmul.f32 %v571, %v606
        %v628 = vmul.f32 %v572, %v591
        %v629 = vmul.f32 %v573, %v596
        %v630 = vmul.f32 %v574, %v601
        %v631 = vmul.f32 %v575, %v606
        %v632 = vmul.f32 %v576, %v591
        %v633 = vmul.f32 %v577, %v596
        %v634 = vmul.f32 %v578, %v601
        %v635 = vmul.f32 %v579, %v606
        %v636 = vmul.f32 %v580, %v591
        %v637 = vmul.f32 %v581, %v596
        %v638 = vmul.f32 %v582, %v601
        %v639 = vmul.f32 %v583, %v606
        %v640 = vsel %vm530, %v608, 0.0
        %v641 = vsel %vm530, %v609, 0.0
        %v642 = vadd.f32 %v640, %v641
        %v643 = vsel %vm530, %v610, 0.0
        %v644 = vadd.f32 %v642, %v643
        %v645 = vsel %vm530, %v611, 0.0
        %v646 = vadd.f32 %v644, %v645
        %v647 = vrot.slane %v646, 4
        %v648 = vadd.f32 %v646, %v647
        %v649 = vrot.slane %v648, 2
        %v650 = vadd.f32 %v648, %v649
        %v651 = vrot.slane %v650, 1
        %v652 = vadd.f32 %v650, %v651
        %v653 = vsel %vm530, %v612, 0.0
        %v654 = vsel %vm530, %v613, 0.0
        %v655 = vadd.f32 %v653, %v654
        %v656 = vsel %vm530, %v614, 0.0
        %v657 = vadd.f32 %v655, %v656
        %v658 = vsel %vm530, %v615, 0.0
        %v659 = vadd.f32 %v657, %v658
        %v660 = vrot.slane %v659, 4
        %v661 = vadd.f32 %v659, %v660
        %v662 = vrot.slane %v661, 2
        %v663 = vadd.f32 %v661, %v662
        %v664 = vrot.slane %v663, 1
        %v665 = vadd.f32 %v663, %v664
        %v666 = vsel %vm530, %v616, 0.0
        %v667 = vsel %vm530, %v617, 0.0
        %v668 = vadd.f32 %v666, %v667
        %v669 = vsel %vm530, %v618, 0.0
        %v670 = vadd.f32 %v668, %v669
        %v671 = vsel %vm530, %v619, 0.0
        %v672 = vadd.f32 %v670, %v671
        %v673 = vrot.slane %v672, 4
        %v674 = vadd.f32 %v672, %v673
        %v675 = vrot.slane %v674, 2
        %v676 = vadd.f32 %v674, %v675
        %v677 = vrot.slane %v676, 1
        %v678 = vadd.f32 %v676, %v677
        %v679 = vsel %vm530, %v620, 0.0
        %v680 = vsel %vm530, %v621, 0.0
        %v681 = vadd.f32 %v679, %v680
        %v682 = vsel %vm530, %v622, 0.0
        %v683 = vadd.f32 %v681, %v682
        %v684 = vsel %vm530, %v623, 0.0
        %v685 = vadd.f32 %v683, %v684
        %v686 = vrot.slane %v685, 4
        %v687 = vadd.f32 %v685, %v686
        %v688 = vrot.slane %v687, 2
        %v689 = vadd.f32 %v687, %v688
        %v690 = vrot.slane %v689, 1
        %v691 = vadd.f32 %v689, %v690
        %v692 = vsel %vm530, %v624, 0.0
        %v693 = vsel %vm530, %v625, 0.0
        %v694 = vadd.f32 %v692, %v693
        %v695 = vsel %vm530, %v626, 0.0
        %v696 = vadd.f32 %v694, %v695
        %v697 = vsel %vm530, %v627, 0.0
        %v698 = vadd.f32 %v696, %v697
        %v699 = vrot.slane %v698, 4
        %v700 = vadd.f32 %v698, %v699
        %v701 = vrot.slane %v700, 2
        %v702 = vadd.f32 %v700, %v701
        %v703 = vrot.slane %v702, 1
        %v704 = vadd.f32 %v702, %v703
        %v705 = vsel %vm530, %v628, 0.0
        %v706 = vsel %vm530, %v629, 0.0
        %v707 = vadd.f32 %v705, %v706
        %v708 = vsel %vm530, %v630, 0.0
        %v709 = vadd.f32 %v707, %v708
        %v710 = vsel %vm530, %v631, 0.0
        %v711 = vadd.f32 %v709, %v710
        %v712 = vrot.slane %v711, 4
        %v713 = vadd.f32 %v711, %v712
        %v714 = vrot.slane %v713, 2
        %v715 = vadd.f32 %v713, %v714
        %v716 = vrot.slane %v715, 1
        %v717 = vadd.f32 %v715, %v716
        %v718 = vsel %vm530, %v632, 0.0
        %v719 = vsel %vm530, %v633, 0.0
        %v720 = vadd.f32 %v718, %v719
        %v721 = vsel %vm530, %v634, 0.0
        %v722 = vadd.f32 %v720, %v721
        %v723 = vsel %vm530, %v635, 0.0
        %v724 = vadd.f32 %v722, %v723
        %v725 = vrot.slane %v724, 4
        %v726 = vadd.f32 %v724, %v725
        %v727 = vrot.slane %v726, 2
        %v728 = vadd.f32 %v726, %v727
        %v729 = vrot.slane %v728, 1
        %v730 = vadd.f32 %v728, %v729
        %v731 = vsel %vm530, %v636, 0.0
        %v732 = vsel %vm530, %v637, 0.0
        %v733 = vadd.f32 %v731, %v732
        %v734 = vsel %vm530, %v638, 0.0
        %v735 = vadd.f32 %v733, %v734
        %v736 = vsel %vm530, %v639, 0.0
        %v737 = vadd.f32 %v735, %v736
        %v738 = vrot.slane %v737, 4
        %v739 = vadd.f32 %v737, %v738
        %v740 = vrot.slane %v739, 2
        %v741 = vadd.f32 %v739, %v740
        %v742 = vrot.slane %v741, 1
        %v743 = vadd.f32 %v741, %v742
        %v744 = vadd.f32 %v652, %v551
        %v745 = vadd.f32 %v665, %v551
        %v746 = vadd.f32 %v678, %v551
        %v747 = vadd.f32 %v691, %v551
        %v748 = vadd.f32 %v704, %v551
        %v749 = vadd.f32 %v717, %v551
        %v750 = vadd.f32 %v730, %v551
        %v751 = vadd.f32 %v743, %v551
        %v752 = vld [vmem:[#allocation2] sm:$0x1]
        %v754 = vlaneseq
        %v755 = vshrl.u32 %v754, 7
        %v756 = vsub.s32 0, %v755
        %v757 = vrot.slane %v752, %v756
        %758 = vset.pattern.permute.xlu0 0
        %759 = vperm.xlu0 %758, %v757
        %v760 = vpop.permute.xlu0 %759
        %v762 = vadd.f32 %v744, %v760
        %v763 = vadd.f32 %v745, %v760
        %v764 = vadd.f32 %v746, %v760
        %v765 = vadd.f32 %v747, %v760
        %v766 = vadd.f32 %v748, %v760
        %v767 = vadd.f32 %v749, %v760
        %v768 = vadd.f32 %v750, %v760
        %v769 = vadd.f32 %v751, %v760
        %v778 = vrot.slane %v763, 7
        %vm779 = vcmask 1041409
        %v780 = vsel %vm779, %v778, %v762
        %v781 = vrot.slane %v764, 6
        %vm782 = vcmask 1042434
        %v783 = vsel %vm782, %v781, %v780
        %v784 = vrot.slane %v765, 5
        %vm785 = vcmask 1043459
        %v786 = vsel %vm785, %v784, %v783
        %v787 = vrot.slane %v766, 4
        %vm788 = vcmask 1044484
        %v789 = vsel %vm788, %v787, %v786
        %v790 = vrot.slane %v767, 3
        %vm791 = vcmask 1045509
        %v792 = vsel %vm791, %v790, %v789
        %v793 = vrot.slane %v768, 2
        %vm794 = vcmask 1046534
        %v795 = vsel %vm794, %v793, %v792
        %v796 = vrot.slane %v769, 1
        %vm797 = vcmask 1047559
        %v798 = vsel %vm797, %v796, %v795
        %v800 = vsel %vm530, %v798, -inf
        %801 = vmax.xlane.f32.xlu0 %v800
        %v802 = vpop.xlane.xlu0 %801
        %v804 = vrot.slane %v802, 1
        %v805 = vrot.slane %v802, 2
        %v806 = vrot.slane %v802, 3
        %v807 = vrot.slane %v802, 4
        %v808 = vrot.slane %v802, 5
        %v809 = vrot.slane %v802, 6
        %v810 = vrot.slane %v802, 7
        %v819 = vsub.f32 %v762, %v802
        %v820 = vsub.f32 %v763, %v804
        %v821 = vsub.f32 %v764, %v805
        %v822 = vsub.f32 %v765, %v806
        %v823 = vsub.f32 %v766, %v807
        %v824 = vsub.f32 %v767, %v808
        %v825 = vsub.f32 %v768, %v809
        %v826 = vsub.f32 %v769, %v810
        %v827 = vmul.f32 %v819, 1.442695
        %v828 = vpow.pop %v827
        %v829 = vmul.f32 %v820, 1.442695
        %v830 = vpow.pop %v829
        %v831 = vmul.f32 %v821, 1.442695
        %v832 = vpow.pop %v831
        %v833 = vmul.f32 %v822, 1.442695
        %v834 = vpow.pop %v833
        %v835 = vmul.f32 %v823, 1.442695
        %v836 = vpow.pop %v835
        %v837 = vmul.f32 %v824, 1.442695
        %v838 = vpow.pop %v837
        %v839 = vmul.f32 %v825, 1.442695
        %v840 = vpow.pop %v839
        %v841 = vmul.f32 %v826, 1.442695
        %v842 = vpow.pop %v841
        %v851 = vrot.slane %v830, 7
        %v852 = vsel %vm779, %v851, %v828
        %v853 = vrot.slane %v832, 6
        %v854 = vsel %vm782, %v853, %v852
        %v855 = vrot.slane %v834, 5
        %v856 = vsel %vm785, %v855, %v854
        %v857 = vrot.slane %v836, 4
        %v858 = vsel %vm788, %v857, %v856
        %v859 = vrot.slane %v838, 3
        %v860 = vsel %vm791, %v859, %v858
        %v861 = vrot.slane %v840, 2
        %v862 = vsel %vm794, %v861, %v860
        %v863 = vrot.slane %v842, 1
        %v864 = vsel %vm797, %v863, %v862
        %v866 = vsel %vm530, %v864, 0.0
        %867 = vadd.xlane.f32.xlu0 %v866
        %v868 = vpop.xlane.xlu0 %867
        %v870 = vrot.slane %v868, 1
        %v871 = vrot.slane %v868, 2
        %v872 = vrot.slane %v868, 3
        %v873 = vrot.slane %v868, 4
        %v874 = vrot.slane %v868, 5
        %v875 = vrot.slane %v868, 6
        %v876 = vrot.slane %v868, 7
        %v885 = vrcp.pop %v868
        %v886 = vmul.f32 %v828, %v885
        %v887 = vrcp.pop %v870
        %v888 = vmul.f32 %v830, %v887
        %v889 = vrcp.pop %v871
        %v890 = vmul.f32 %v832, %v889
        %v891 = vrcp.pop %v872
        %v892 = vmul.f32 %v834, %v891
        %v893 = vrcp.pop %v873
        %v894 = vmul.f32 %v836, %v893
        %v895 = vrcp.pop %v874
        %v896 = vmul.f32 %v838, %v895
        %v897 = vrcp.pop %v875
        %v898 = vmul.f32 %v840, %v897
        %v899 = vrcp.pop %v876
        %v900 = vmul.f32 %v842, %v899
        %v909 = vrot.slane %v888, 7
        %v910 = vsel %vm779, %v909, %v886
        %v911 = vrot.slane %v890, 6
        %v912 = vsel %vm782, %v911, %v910
        %v913 = vrot.slane %v892, 5
        %v914 = vsel %vm785, %v913, %v912
        %v915 = vrot.slane %v894, 4
        %v916 = vsel %vm788, %v915, %v914
        %v917 = vrot.slane %v896, 3
        %v918 = vsel %vm791, %v917, %v916
        %v919 = vrot.slane %v898, 2
        %v920 = vsel %vm794, %v919, %v918
        %v921 = vrot.slane %v900, 1
        %v922 = vsel %vm797, %v921, %v920
        %924 = vst.msk [vmem:[%s276] sm:$0xff] %vm530, %v922
        %s925 = sand.u32 %s183, 1
        %s926 = scalar_lea.sflag [#allocation4], %s925
        %s927 = sand.u32 %s183, 1
        %s928 = smul.addr %s927, 8
        %s929 = scalar_lea.vmem [#allocation3], %s928
        // Predicated region
        $region49: #{tpu_custom_call.1} parent=47 // pred_check
          %p930 = pneg %p193
        $region50: #{tpu_custom_call.1} parent=47 // pred_check_branch
          %932 = sbr.rel (%p930) target = $region52
        $region51: #{tpu_custom_call.1} parent=47 // pred_region
          %s934 = ssub.s32 128, 128
          %935 = vsyncadd %s926, %s934
          %s936 = smul.addr %s23, 128
          %s937 = scalar_lea.hbm %s7, %s936
          %s939 = sshll.u32 %s929, 4
          %s940 = int_to_ptr.vmem [resolvable:$true] %s939
          %942 = dma.vmem_to_hbm [thread:$0]  %s940, 128, %s937, %s926
        $region52: #{tpu_custom_call.1} parent=47 // pred_fallthru
          _
      $region48: #{tpu_custom_call.1} parent=5 // pred_fallthru
        _
      %p943 = scmp.le.s32.totalorder 2, %s18
      // Predicated region
      $region53: #{tpu_custom_call.1} parent=5 // pred_check
        %p944 = pneg %p943
      $region54: #{tpu_custom_call.1} parent=5 // pred_check_branch
        %946 = sbr.rel (%p944) target = $region56
      $region55: #{tpu_custom_call.1} parent=5 // pred_region
        %s947 = ssub.s32 %s18, 2
        // Predicated region
        $region57: #{tpu_custom_call.1} parent=55 // pred_check
          %p948 = pneg %p199
        $region58: #{tpu_custom_call.1} parent=55 // pred_check_branch
          %950 = sbr.rel (%p948) target = $region60
        $region59: #{tpu_custom_call.1} parent=55 // pred_region
          %s951 = sand.u32 %s184, 1
          %s952 = scalar_lea.sflag [#allocation4], %s951
          %s953 = sand.u32 %s184, 1
          %s954 = smul.addr %s953, 8
          %s955 = scalar_lea.vmem [#allocation3], %s954
          %956 = dma.done %s952, 128
        $region60: #{tpu_custom_call.1} parent=55 // pred_fallthru
          _
      $region56: #{tpu_custom_call.1} parent=5 // pred_fallthru
        _
    $region6: #{tpu_custom_call.1} parent=1 // loop_footer
      %s22 = sadd.s32 1, %s18
    $region7: #{tpu_custom_call.1} parent=1 // loop_footer_branch
      %17 = sbr.rel target = $region3
    $region8: #{tpu_custom_call.1} parent=1 // loop_exit
      _
    %957 = vsyncpa [#allocation4], 1
    %s958 = scalar_lea.sflag [#allocation4], 1
    %959 = vsyncpa %s958, 1

</llo_original>
